<compile_context>
chip_gen: v6e
topology: v6e:2x2x1
jax: 0.10.0
libtpu: 0.0.40
codegen_flags: <defaults>
</compile_context>

<pallas_src>
import math

import jax
import jax.numpy as jnp
from jax.experimental import pallas as pl
from jax.experimental.pallas import tpu as pltpu


def _round_up(x, m):
    return ((x + m - 1) // m) * m


# ----------------------------------------------------------------------------
# Pallas kernel: out = SiLU(patches @ W_folded + shift)
#   (W_folded already carries the BN scale; shift = beta - mean * scale)
# ----------------------------------------------------------------------------
def _matmul_bn_silu_kernel(p_ref, w_ref, s_ref, o_ref, acc_ref):
    k = pl.program_id(2)

    @pl.when(k == 0)
    def _():
        acc_ref[...] = jnp.zeros_like(acc_ref)

    acc_ref[...] += jnp.dot(p_ref[...], w_ref[...],
                            preferred_element_type=jnp.float32)

    @pl.when(k == pl.num_programs(2) - 1)
    def _():
        y = acc_ref[...] + s_ref[...]
        sig = pl.reciprocal(1.0 + jnp.exp(-y), approx=True)  # EUP, ~free slot
        o_ref[...] = (y * sig).astype(o_ref.dtype)


def fused_matmul_bn_silu(patches, w_folded, shift, *, tm=256, tn=128, tk=256):
    """patches (M, K) f32, w_folded (K, Cout) f32, shift (1, Cout) f32
    -> (M, Cout) f32 = SiLU(patches @ w_folded + shift)."""
    M, K = patches.shape
    _, cout = w_folded.shape

    # Clamp tiles to the (padded) problem, keeping TPU tiling constraints:
    # second-to-last dims multiples of 8, last dims multiples of 128.
    tm = min(tm, _round_up(M, 8))
    tk = min(tk, _round_up(K, 128))
    tn = min(tn, _round_up(cout, 128))
    mp, kp, np_ = _round_up(M, tm), _round_up(K, tk), _round_up(cout, tn)

    # Zero-padding K/Cout is exact (zero rows/cols contribute nothing); the
    # padded output columns are sliced away below.  bf16 operands -> MXU peak.
    p = jnp.pad(patches, ((0, mp - M), (0, kp - K))).astype(jnp.bfloat16)
    w = jnp.pad(w_folded, ((0, kp - K), (0, np_ - cout))).astype(jnp.bfloat16)
    s = jnp.pad(shift, ((0, 0), (0, np_ - cout))).astype(jnp.float32)

    grid = (mp // tm, np_ // tn, kp // tk)  # reduction (K) axis last
    out = pl.pallas_call(
        _matmul_bn_silu_kernel,
        out_shape=jax.ShapeDtypeStruct((mp, np_), jnp.float32),
        grid_spec=pltpu.PrefetchScalarGridSpec(
            num_scalar_prefetch=0,
            grid=grid,
            in_specs=[
                pl.BlockSpec((tm, tk), lambda i, j, k: (i, k)),
                pl.BlockSpec((tk, tn), lambda i, j, k: (k, j)),
                pl.BlockSpec((1, tn), lambda i, j, k: (0, j)),
            ],
            out_specs=pl.BlockSpec((tm, tn), lambda i, j, k: (i, j)),
            scratch_shapes=[pltpu.VMEM((tm, tn), jnp.float32)],
        ),
        compiler_params=pltpu.CompilerParams(
            dimension_semantics=("parallel", "parallel", "arbitrary"),
            vmem_limit_bytes=32 * 1024 * 1024,
        ),
    )(p, w, s)
    return out[:M, :cout]


# ----------------------------------------------------------------------------
# Focus forward (NHWC internally)
# ----------------------------------------------------------------------------
def focus_space_to_depth(x_nhwc):
    """(N, H, W, C) -> (N, H/2, W/2, 4C), channel order (tl, bl, tr, br).

    Single reshape + transpose (one XLA op) instead of 4 strided slices +
    concat; the row-major flatten of (col_parity, row_parity, C) reproduces
    torch.cat((tl, bl, tr, br), dim=1) channel ordering.
    """
    n, h, w, c = x_nhwc.shape
    ho, wo = h // 2, w // 2
    x6 = x_nhwc.reshape(n, ho, 2, wo, 2, c)        # (N, Ho, r, Wo, cp, C)
    x6 = jnp.transpose(x6, (0, 1, 3, 4, 2, 5))     # (N, Ho, Wo, cp, r, C)
    return x6.reshape(n, ho, wo, 4 * c)            # tap = cp*2 + r: tl,bl,tr,br


def focus_fwd(x_nhwc, w_folded, shift):
    """Focus with BaseConv(ksize=1, stride=1, norm='bn', act='silu')."""
    n, h, w, c = x_nhwc.shape
    ho, wo = h // 2, w // 2
    patches = focus_space_to_depth(x_nhwc).reshape(n * ho * wo, 4 * c)
    out = fused_matmul_bn_silu(patches, w_folded, shift)
    return out.reshape(n, ho, wo, -1)


# ----------------------------------------------------------------------------
# Main
# ----------------------------------------------------------------------------
if __name__ == "__main__":
    # Focus(in_channels=4, out_channels=32, ksize=1, stride=1) on a
    # PyTorch-style NCHW input (2, 4, 16, 16).
    N, CIN, H, W = 2, 4, 16, 16
    COUT = 32
    K = 4 * CIN  # Focus concatenates 4 taps along channels

    key = jax.random.PRNGKey(0)
    kx, kw, kg, kb, km, kv = jax.random.split(key, 6)

    x_nchw = jax.random.normal(kx, (N, CIN, H, W), jnp.float32)

    # Conv2d weight in PyTorch layout (Cout, 4*Cin, 1, 1), bias=False.
    w_pt = jax.random.normal(kw, (COUT, K, 1, 1), jnp.float32) / math.sqrt(K)
    # BatchNorm2d(eps=0.001) inference params.
    gamma = 1.0 + 0.1 * jax.random.normal(kg, (COUT,), jnp.float32)
    beta = 0.1 * jax.random.normal(kb, (COUT,), jnp.float32)
    mean = 0.1 * jax.random.normal(km, (COUT,), jnp.float32)
    var = 1.0 + 0.1 * jnp.abs(jax.random.normal(kv, (COUT,), jnp.float32))
    eps = 1e-3
    scale = gamma / jnp.sqrt(var + eps)
    shift = (beta - mean * scale).reshape(1, COUT)
    # Fold BN scale into the weight columns: epilogue is just `acc + shift`.
    w_folded = jnp.transpose(w_pt[:, :, 0, 0], (1, 0)) * scale[None, :]  # (K, Cout)

    x_nhwc = jnp.transpose(x_nchw, (0, 2, 3, 1))

    fwd = jax.jit(lambda xx: focus_fwd(xx, w_folded, shift))
    out = fwd(x_nhwc)
    jax.block_until_ready(out)

    # Sanity checks (no prints besides the final marker).
    assert out.shape == (N, H // 2, W // 2, COUT)
    assert bool(jnp.all(jnp.isfinite(out)))

    # Pure-JAX f32 reference (loose tolerance for bf16 MXU operands + approx
    # reciprocal in the SiLU epilogue).
    patches_ref = focus_space_to_depth(x_nhwc).reshape(N * (H // 2) * (W // 2), K)
    y_ref = patches_ref @ w_folded + shift
    ref = (y_ref * jax.nn.sigmoid(y_ref)).reshape(N, H // 2, W // 2, COUT)
    max_err = float(jnp.max(jnp.abs(out - ref)))
    assert max_err < 0.25, f"max abs error {max_err}"

    print("KERNEL_OK")
</pallas_src>

<mosaic_0001>
module attributes {stable_mosaic.version = 11 : i64} {
  func.func @_matmul_bn_silu_kernel(%arg0: i32, %arg1: i32, %arg2: i32, %arg3: memref<128x128xbf16, #tpu.memory_space<vmem>>, %arg4: memref<128x128xbf16, #tpu.memory_space<vmem>>, %arg5: memref<1x128xf32, #tpu.memory_space<vmem>>, %arg6: memref<128x128xf32, #tpu.memory_space<vmem>>, %arg7: memref<128x128xf32, #tpu.memory_space<vmem>>) attributes {dimension_semantics = [#tpu.dimension_semantics<parallel>, #tpu.dimension_semantics<parallel>, #tpu.dimension_semantics<arbitrary>], iteration_bounds = array<i64: 1, 1, 1>, scalar_prefetch = 0 : i64, scratch_operands = 1 : i64, tpu.core_type = #tpu.core_type<tc>, window_params = [{transform_indices = @transform_0, window_bounds = array<i64: 128, 128>}, {transform_indices = @transform_1, window_bounds = array<i64: 128, 128>}, {transform_indices = @transform_2, window_bounds = array<i64: 1, 128>}, {transform_indices = @transform_3, window_bounds = array<i64: 128, 128>}]} {
    %c0_i32 = arith.constant 0 : i32
    %0 = arith.cmpi eq, %arg2, %c0_i32 : i32
    %1 = arith.extui %0 : i1 to i32
    %c0_i32_0 = arith.constant 0 : i32
    %2 = arith.cmpi ne, %1, %c0_i32_0 : i32
    scf.if %2 {
      %cst_10 = arith.constant 0.000000e+00 : f32
      %12 = vector.broadcast %cst_10 : f32 to vector<128x128xf32>
      %c0_11 = arith.constant 0 : index
      %c0_12 = arith.constant 0 : index
      %13 = vector.load %arg7[%c0_11, %c0_12] : memref<128x128xf32, #tpu.memory_space<vmem>>, vector<128x128xf32>
      tpu.vector_store %arg7[%c0_11, %c0_12], %12 {strides = array<i32>} : memref<128x128xf32, #tpu.memory_space<vmem>>, vector<128x128xf32>,
    } else {
    }
    %c0 = arith.constant 0 : index
    %c0_1 = arith.constant 0 : index
    %3 = vector.load %arg7[%c0, %c0_1] : memref<128x128xf32, #tpu.memory_space<vmem>>, vector<128x128xf32>
    %c0_2 = arith.constant 0 : index
    %c0_3 = arith.constant 0 : index
    %4 = vector.load %arg3[%c0_2, %c0_3] : memref<128x128xbf16, #tpu.memory_space<vmem>>, vector<128x128xbf16>
    %c0_4 = arith.constant 0 : index
    %c0_5 = arith.constant 0 : index
    %5 = vector.load %arg4[%c0_4, %c0_5] : memref<128x128xbf16, #tpu.memory_space<vmem>>, vector<128x128xbf16>
    %cst = arith.constant dense<0.000000e+00> : vector<128x128xf32>
    %6 = tpu.matmul %4, %5, %cst {dimension_numbers = #tpu.dot_dimension_numbers<[1], [0], [0], [1], [0, 0, 1, 1], [], []>} : vector<128x128xbf16>, vector<128x128xbf16>, vector<128x128xf32> -> vector<128x128xf32>
    %7 = arith.addf %3, %6 : vector<128x128xf32>
    %c0_6 = arith.constant 0 : index
    %c0_7 = arith.constant 0 : index
    %8 = vector.load %arg7[%c0_6, %c0_7] : memref<128x128xf32, #tpu.memory_space<vmem>>, vector<128x128xf32>
    tpu.vector_store %arg7[%c0_6, %c0_7], %7 {strides = array<i32>} : memref<128x128xf32, #tpu.memory_space<vmem>>, vector<128x128xf32>,
    %c0_i32_8 = arith.constant 0 : i32
    %9 = arith.cmpi eq, %arg2, %c0_i32_8 : i32
    %10 = arith.extui %9 : i1 to i32
    %c0_i32_9 = arith.constant 0 : i32
    %11 = arith.cmpi ne, %10, %c0_i32_9 : i32
    scf.if %11 {
      %c0_10 = arith.constant 0 : index
      %c0_11 = arith.constant 0 : index
      %12 = vector.load %arg7[%c0_10, %c0_11] : memref<128x128xf32, #tpu.memory_space<vmem>>, vector<128x128xf32>
      %c0_12 = arith.constant 0 : index
      %c0_13 = arith.constant 0 : index
      %13 = vector.load %arg5[%c0_12, %c0_13] : memref<1x128xf32, #tpu.memory_space<vmem>>, vector<1x128xf32>
      %14 = vector.broadcast %13 : vector<1x128xf32> to vector<128x128xf32>
      %15 = arith.addf %12, %14 : vector<128x128xf32>
      %cst_14 = arith.constant 0.000000e+00 : f32
      %16 = vector.broadcast %cst_14 : f32 to vector<128x128xf32>
      %17 = arith.subf %16, %15 : vector<128x128xf32>
      %18 = math.exp %17 : vector<128x128xf32>
      %cst_15 = arith.constant 1.000000e+00 : f32
      %19 = vector.broadcast %cst_15 : f32 to vector<128x128xf32>
      %20 = arith.addf %19, %18 : vector<128x128xf32>
      %21 = tpu.reciprocal %20 {approx = true} : vector<128x128xf32> -> vector<128x128xf32>
      %22 = arith.mulf %15, %21 : vector<128x128xf32>
      %c0_16 = arith.constant 0 : index
      %c0_17 = arith.constant 0 : index
      %23 = vector.load %arg6[%c0_16, %c0_17] : memref<128x128xf32, #tpu.memory_space<vmem>>, vector<128x128xf32>
      tpu.vector_store %arg6[%c0_16, %c0_17], %22 {strides = array<i32>} : memref<128x128xf32, #tpu.memory_space<vmem>>, vector<128x128xf32>,
    } else {
    }
    return
  }
  func.func @transform_0(%arg0: i32, %arg1: i32, %arg2: i32) -> (i32, i32) {
    %c0_i32 = arith.constant 0 : i32
    return %arg0, %arg2 : i32, i32
  }
  func.func @transform_1(%arg0: i32, %arg1: i32, %arg2: i32) -> (i32, i32) {
    %c0_i32 = arith.constant 0 : i32
    return %arg2, %arg1 : i32, i32
  }
  func.func @transform_2(%arg0: i32, %arg1: i32, %arg2: i32) -> (i32, i32) {
    %c0_i32 = arith.constant 0 : i32
    %c0_i32_0 = arith.constant 0 : i32
    return %c0_i32, %arg1 : i32, i32
  }
  func.func @transform_3(%arg0: i32, %arg1: i32, %arg2: i32) -> (i32, i32) {
    %c0_i32 = arith.constant 0 : i32
    return %arg0, %arg1 : i32, i32
  }
}

</mosaic_0001>

<llo_original>
// kernel: _lambda_.1
$region0: #{_lambda_.1}
  #allocation0 [shape = 'u32[]', space=smem, size = 0x4, offset = 0x4, fixed_abs, tag = 'smem constant byte address 0x4 - core index']
  #allocation1 [shape = 'u32[144,128]{1,0:T(1,128)}', space=vmem, size = 0x12000, scoped, tag = 'internal scratch']
  #allocation2 [shape = 'f32[128,128]{1,0:T(8,128)}', space=vmem, size = 0x10000, scoped, tag = 'scratch operand']
  %s0 = inlined_call_operand.vmem [shape: bf16[128,128], index: 0, kind: input, shape index: {}]
  %s1 = inlined_call_operand.vmem [shape: bf16[128,128], index: 1, kind: input, shape index: {}]
  %s2 = inlined_call_operand.vmem [shape: f32[1,128], index: 2, kind: input, shape index: {}]
  %s3 = inlined_call_operand.hbm [shape: f32[128,128], index: 3, kind: output, shape index: {}]
  %s4 = sld [smem:[#allocation0]]
  $region30: #{_lambda_.1} parent=0
    _
  %s6 = ssub.s32 1, %s4
  %s7 = scalar_select 0, %s6, %s4
  $region1: #{_lambda_.1} parent=0
    #allocation3 [shape = 'u8[65536]{0}', space=vmem, size = 0x10000, scoped, tag = 'output window, operand 0, single buffered']
    #allocation4 [shape = 's32[1]{0}', space=sflag, size = 0x4, scoped, tag = 'scoped memory for _lambda_.1']
    %8 = vsyncpa [#allocation4], 0
    // Predicated region
    $region2: #{_lambda_.1} parent=1 // pred_check
      _
    $region3: #{_lambda_.1} parent=1 // pred_check_branch
      %10 = sbr.rel (0) target = $region5
    $region4: #{_lambda_.1} parent=1 // pred_region
      _
    $region5: #{_lambda_.1} parent=1 // pred_fallthru
      _
    // Predicated region
    $region6: #{_lambda_.1} parent=1 // pred_check
      _
    $region7: #{_lambda_.1} parent=1 // pred_check_branch
      %12 = sbr.rel (0) target = $region9
    $region8: #{_lambda_.1} parent=1 // pred_region
      _
    $region9: #{_lambda_.1} parent=1 // pred_fallthru
      _
    // Predicated region
    $region10: #{_lambda_.1} parent=1 // pred_check
      _
    $region11: #{_lambda_.1} parent=1 // pred_check_branch
      %14 = sbr.rel (0) target = $region13
    $region12: #{_lambda_.1} parent=1 // pred_region
      _
    $region13: #{_lambda_.1} parent=1 // pred_fallthru
      _
    %p16 = scmp.eq.s32.totalorder 0, 0
    // Predicated region
    $region14: #{_lambda_.1} parent=1 // pred_check
      %p17 = pneg %p16
    $region15: #{_lambda_.1} parent=1 // pred_check_branch
      %19 = sbr.rel (%p17) target = $region17
    $region16: #{_lambda_.1} parent=1 // pred_region
      %20 = vst [vmem:[#allocation2] sm:$0xff] 0.0
      %21 = vst [vmem:[#allocation2 + $0x8] sm:$0xff] 0.0
      %22 = vst [vmem:[#allocation2 + $0x10] sm:$0xff] 0.0
      %23 = vst [vmem:[#allocation2 + $0x18] sm:$0xff] 0.0
      %24 = vst [vmem:[#allocation2 + $0x20] sm:$0xff] 0.0
      %25 = vst [vmem:[#allocation2 + $0x28] sm:$0xff] 0.0
      %26 = vst [vmem:[#allocation2 + $0x30] sm:$0xff] 0.0
      %27 = vst [vmem:[#allocation2 + $0x38] sm:$0xff] 0.0
      %28 = vst [vmem:[#allocation2 + $0x40] sm:$0xff] 0.0
      %29 = vst [vmem:[#allocation2 + $0x48] sm:$0xff] 0.0
      %30 = vst [vmem:[#allocation2 + $0x50] sm:$0xff] 0.0
      %31 = vst [vmem:[#allocation2 + $0x58] sm:$0xff] 0.0
      %32 = vst [vmem:[#allocation2 + $0x60] sm:$0xff] 0.0
      %33 = vst [vmem:[#allocation2 + $0x68] sm:$0xff] 0.0
      %34 = vst [vmem:[#allocation2 + $0x70] sm:$0xff] 0.0
      %35 = vst [vmem:[#allocation2 + $0x78] sm:$0xff] 0.0
    $region17: #{_lambda_.1} parent=1 // pred_fallthru
      _
    %v36 = vld [vmem:[#allocation2] sm:$0xff]
    %v37 = vld [vmem:[#allocation2 + $0x8] sm:$0xff]
    %v38 = vld [vmem:[#allocation2 + $0x10] sm:$0xff]
    %v39 = vld [vmem:[#allocation2 + $0x18] sm:$0xff]
    %v40 = vld [vmem:[#allocation2 + $0x20] sm:$0xff]
    %v41 = vld [vmem:[#allocation2 + $0x28] sm:$0xff]
    %v42 = vld [vmem:[#allocation2 + $0x30] sm:$0xff]
    %v43 = vld [vmem:[#allocation2 + $0x38] sm:$0xff]
    %v44 = vld [vmem:[#allocation2 + $0x40] sm:$0xff]
    %v45 = vld [vmem:[#allocation2 + $0x48] sm:$0xff]
    %v46 = vld [vmem:[#allocation2 + $0x50] sm:$0xff]
    %v47 = vld [vmem:[#allocation2 + $0x58] sm:$0xff]
    %v48 = vld [vmem:[#allocation2 + $0x60] sm:$0xff]
    %v49 = vld [vmem:[#allocation2 + $0x68] sm:$0xff]
    %v50 = vld [vmem:[#allocation2 + $0x70] sm:$0xff]
    %v51 = vld [vmem:[#allocation2 + $0x78] sm:$0xff]
    %v52 = vld [vmem:[%s0] sm:$0xf]
    %v53 = vld [vmem:[%s0 + $0x4] sm:$0xf]
    %v54 = vld [vmem:[%s0 + $0x8] sm:$0xf]
    %v55 = vld [vmem:[%s0 + $0xc] sm:$0xf]
    %v56 = vld [vmem:[%s0 + $0x10] sm:$0xf]
    %v57 = vld [vmem:[%s0 + $0x14] sm:$0xf]
    %v58 = vld [vmem:[%s0 + $0x18] sm:$0xf]
    %v59 = vld [vmem:[%s0 + $0x1c] sm:$0xf]
    %v60 = vld [vmem:[%s0 + $0x20] sm:$0xf]
    %v61 = vld [vmem:[%s0 + $0x24] sm:$0xf]
    %v62 = vld [vmem:[%s0 + $0x28] sm:$0xf]
    %v63 = vld [vmem:[%s0 + $0x2c] sm:$0xf]
    %v64 = vld [vmem:[%s0 + $0x30] sm:$0xf]
    %v65 = vld [vmem:[%s0 + $0x34] sm:$0xf]
    %v66 = vld [vmem:[%s0 + $0x38] sm:$0xf]
    %v67 = vld [vmem:[%s0 + $0x3c] sm:$0xf]
    %v68 = vld [vmem:[%s1] sm:$0xf]
    %v69 = vld [vmem:[%s1 + $0x4] sm:$0xf]
    %v70 = vld [vmem:[%s1 + $0x8] sm:$0xf]
    %v71 = vld [vmem:[%s1 + $0xc] sm:$0xf]
    %v72 = vld [vmem:[%s1 + $0x10] sm:$0xf]
    %v73 = vld [vmem:[%s1 + $0x14] sm:$0xf]
    %v74 = vld [vmem:[%s1 + $0x18] sm:$0xf]
    %v75 = vld [vmem:[%s1 + $0x1c] sm:$0xf]
    %v76 = vld [vmem:[%s1 + $0x20] sm:$0xf]
    %v77 = vld [vmem:[%s1 + $0x24] sm:$0xf]
    %v78 = vld [vmem:[%s1 + $0x28] sm:$0xf]
    %v79 = vld [vmem:[%s1 + $0x2c] sm:$0xf]
    %v80 = vld [vmem:[%s1 + $0x30] sm:$0xf]
    %v81 = vld [vmem:[%s1 + $0x34] sm:$0xf]
    %v82 = vld [vmem:[%s1 + $0x38] sm:$0xf]
    %v83 = vld [vmem:[%s1 + $0x3c] sm:$0xf]
    %v100 = vunpack.c.l.b16 %v52
    %v101 = vunpack.c.l.b16 %v53
    %v102 = vunpack.c.l.b16 %v54
    %v103 = vunpack.c.l.b16 %v55
    %v104 = vunpack.c.l.b16 %v56
    %v105 = vunpack.c.l.b16 %v57
    %v106 = vunpack.c.l.b16 %v58
    %v107 = vunpack.c.l.b16 %v59
    %v108 = vunpack.c.l.b16 %v60
    %v109 = vunpack.c.l.b16 %v61
    %v110 = vunpack.c.l.b16 %v62
    %v111 = vunpack.c.l.b16 %v63
    %v112 = vunpack.c.l.b16 %v64
    %v113 = vunpack.c.l.b16 %v65
    %v114 = vunpack.c.l.b16 %v66
    %v115 = vunpack.c.l.b16 %v67
    %v116 = vpack.c.b16 %v101, %v100
    %v117 = vpack.c.b16 %v103, %v102
    %v118 = vpack.c.b16 %v105, %v104
    %v119 = vpack.c.b16 %v107, %v106
    %v120 = vpack.c.b16 %v109, %v108
    %v121 = vpack.c.b16 %v111, %v110
    %v122 = vpack.c.b16 %v113, %v112
    %v123 = vpack.c.b16 %v115, %v114
    %v148 = vunpack.c.l.b16 %v68
    %v149 = vunpack.c.l.b16 %v69
    %v150 = vunpack.c.l.b16 %v70
    %v151 = vunpack.c.l.b16 %v71
    %v152 = vunpack.c.l.b16 %v72
    %v153 = vunpack.c.l.b16 %v73
    %v154 = vunpack.c.l.b16 %v74
    %v155 = vunpack.c.l.b16 %v75
    %v156 = vunpack.c.l.b16 %v76
    %v157 = vunpack.c.l.b16 %v77
    %v158 = vunpack.c.l.b16 %v78
    %v159 = vunpack.c.l.b16 %v79
    %v160 = vunpack.c.l.b16 %v80
    %v161 = vunpack.c.l.b16 %v81
    %v162 = vunpack.c.l.b16 %v82
    %v163 = vunpack.c.l.b16 %v83
    %v164 = vpack.c.b16 %v149, %v148
    %v165 = vpack.c.b16 %v151, %v150
    %v166 = vpack.c.b16 %v153, %v152
    %v167 = vpack.c.b16 %v155, %v154
    %v168 = vpack.c.b16 %v157, %v156
    %v169 = vpack.c.b16 %v159, %v158
    %v170 = vpack.c.b16 %v161, %v160
    %v171 = vpack.c.b16 %v163, %v162
    %180 = vmatprep.subr.bf16.mxu0 0
    %181 = vmatpush1.bf16.msra.mxu0 %v171
    %182 = vmatprep.subr.bf16.mxu0 0
    %183 = vmatpush1.bf16.msra.mxu0 %v170
    %184 = vmatprep.subr.bf16.mxu0 0
    %185 = vmatpush1.bf16.msra.mxu0 %v169
    %186 = vmatprep.subr.bf16.mxu0 0
    %187 = vmatpush1.bf16.msra.mxu0 %v168
    %188 = vmatprep.subr.bf16.mxu0 0
    %189 = vmatpush1.bf16.msra.mxu0 %v167
    %190 = vmatprep.subr.bf16.mxu0 0
    %191 = vmatpush1.bf16.msra.mxu0 %v166
    %192 = vmatprep.subr.bf16.mxu0 0
    %193 = vmatpush1.bf16.msra.mxu0 %v165
    %194 = vmatprep.subr.bf16.mxu0 0
    %195 = vmatpush1.bf16.msra.mxu0 %v164
    %196 = vmatprep.subr.bf16.mxu0 0
    %197 = vmatpush2.bf16.msra.mxu0 0
    %198 = vmatprep.subr.bf16.mxu0 0
    %199 = vmatpush2.bf16.msra.mxu0 0
    %200 = vmatprep.subr.bf16.mxu0 0
    %201 = vmatpush2.bf16.msra.mxu0 0
    %202 = vmatprep.subr.bf16.mxu0 0
    %203 = vmatpush2.bf16.msra.mxu0 0
    %204 = vmatprep.subr.bf16.mxu0 0
    %205 = vmatpush2.bf16.msra.mxu0 0
    %206 = vmatprep.subr.bf16.mxu0 0
    %207 = vmatpush2.bf16.msra.mxu0 0
    %208 = vmatprep.subr.bf16.mxu0 0
    %209 = vmatpush2.bf16.msra.mxu0 0
    %210 = vmatprep.subr.bf16.mxu0 0
    %211 = vmatpush2.bf16.msra.mxu0 0
    %212 = vmatprep.mubr.bf16.mxu0 0
    %213 = vmatmul.mubr.bf16.gmra.mxu0 %v116
    %v214 = vpop.f32.mrf.mxu0
    %v215 = vadd.f32 0.0, %v214
    %v216 = vpop.f32.mrf.mxu0
    %v217 = vpop.f32.mrf.mxu0
    %v218 = vadd.f32 0.0, %v217
    %v219 = vpop.f32.mrf.mxu0
    %220 = vmatprep.mubr.bf16.mxu0 0
    %221 = vmatmul.mubr.bf16.gmra.mxu0 %v117
    %v222 = vpop.f32.mrf.mxu0
    %v223 = vadd.f32 0.0, %v222
    %v224 = vpop.f32.mrf.mxu0
    %v225 = vpop.f32.mrf.mxu0
    %v226 = vadd.f32 0.0, %v225
    %v227 = vpop.f32.mrf.mxu0
    %228 = vmatprep.mubr.bf16.mxu0 0
    %229 = vmatmul.mubr.bf16.gmra.mxu0 %v118
    %v230 = vpop.f32.mrf.mxu0
    %v231 = vadd.f32 0.0, %v230
    %v232 = vpop.f32.mrf.mxu0
    %v233 = vpop.f32.mrf.mxu0
    %v234 = vadd.f32 0.0, %v233
    %v235 = vpop.f32.mrf.mxu0
    %236 = vmatprep.mubr.bf16.mxu0 0
    %237 = vmatmul.mubr.bf16.gmra.mxu0 %v119
    %v238 = vpop.f32.mrf.mxu0
    %v239 = vadd.f32 0.0, %v238
    %v240 = vpop.f32.mrf.mxu0
    %v241 = vpop.f32.mrf.mxu0
    %v242 = vadd.f32 0.0, %v241
    %v243 = vpop.f32.mrf.mxu0
    %244 = vmatprep.mubr.bf16.mxu0 0
    %245 = vmatmul.mubr.bf16.gmra.mxu0 %v120
    %v246 = vpop.f32.mrf.mxu0
    %v247 = vadd.f32 0.0, %v246
    %v248 = vpop.f32.mrf.mxu0
    %v249 = vpop.f32.mrf.mxu0
    %v250 = vadd.f32 0.0, %v249
    %v251 = vpop.f32.mrf.mxu0
    %252 = vmatprep.mubr.bf16.mxu0 0
    %253 = vmatmul.mubr.bf16.gmra.mxu0 %v121
    %v254 = vpop.f32.mrf.mxu0
    %v255 = vadd.f32 0.0, %v254
    %v256 = vpop.f32.mrf.mxu0
    %v257 = vpop.f32.mrf.mxu0
    %v258 = vadd.f32 0.0, %v257
    %v259 = vpop.f32.mrf.mxu0
    %260 = vmatprep.mubr.bf16.mxu0 0
    %261 = vmatmul.mubr.bf16.gmra.mxu0 %v122
    %v262 = vpop.f32.mrf.mxu0
    %v263 = vadd.f32 0.0, %v262
    %v264 = vpop.f32.mrf.mxu0
    %v265 = vpop.f32.mrf.mxu0
    %v266 = vadd.f32 0.0, %v265
    %v267 = vpop.f32.mrf.mxu0
    %268 = vmatprep.mubr.bf16.mxu0 0
    %269 = vmatmul.mubr.bf16.gmra.mxu0 %v123
    %v270 = vpop.f32.mrf.mxu0
    %v271 = vadd.f32 0.0, %v270
    %v272 = vpop.f32.mrf.mxu0
    %v273 = vpop.f32.mrf.mxu0
    %v274 = vadd.f32 0.0, %v273
    %v275 = vpop.f32.mrf.mxu0
    %276 = vdwg.mxu0
    %v277 = vadd.f32 %v36, %v215
    %v278 = vadd.f32 %v37, %v218
    %v279 = vadd.f32 %v38, %v223
    %v280 = vadd.f32 %v39, %v226
    %v281 = vadd.f32 %v40, %v231
    %v282 = vadd.f32 %v41, %v234
    %v283 = vadd.f32 %v42, %v239
    %v284 = vadd.f32 %v43, %v242
    %v285 = vadd.f32 %v44, %v247
    %v286 = vadd.f32 %v45, %v250
    %v287 = vadd.f32 %v46, %v255
    %v288 = vadd.f32 %v47, %v258
    %v289 = vadd.f32 %v48, %v263
    %v290 = vadd.f32 %v49, %v266
    %v291 = vadd.f32 %v50, %v271
    %v292 = vadd.f32 %v51, %v274
    %293 = vst [vmem:[#allocation2] sm:$0xff] %v277
    %294 = vst [vmem:[#allocation2 + $0x8] sm:$0xff] %v278
    %295 = vst [vmem:[#allocation2 + $0x10] sm:$0xff] %v279
    %296 = vst [vmem:[#allocation2 + $0x18] sm:$0xff] %v280
    %297 = vst [vmem:[#allocation2 + $0x20] sm:$0xff] %v281
    %298 = vst [vmem:[#allocation2 + $0x28] sm:$0xff] %v282
    %299 = vst [vmem:[#allocation2 + $0x30] sm:$0xff] %v283
    %300 = vst [vmem:[#allocation2 + $0x38] sm:$0xff] %v284
    %301 = vst [vmem:[#allocation2 + $0x40] sm:$0xff] %v285
    %302 = vst [vmem:[#allocation2 + $0x48] sm:$0xff] %v286
    %303 = vst [vmem:[#allocation2 + $0x50] sm:$0xff] %v287
    %304 = vst [vmem:[#allocation2 + $0x58] sm:$0xff] %v288
    %305 = vst [vmem:[#allocation2 + $0x60] sm:$0xff] %v289
    %306 = vst [vmem:[#allocation2 + $0x68] sm:$0xff] %v290
    %307 = vst [vmem:[#allocation2 + $0x70] sm:$0xff] %v291
    %308 = vst [vmem:[#allocation2 + $0x78] sm:$0xff] %v292
    // Predicated region
    $region18: #{_lambda_.1} parent=1 // pred_check
      %p309 = pneg %p16
    $region19: #{_lambda_.1} parent=1 // pred_check_branch
      %311 = sbr.rel (%p309) target = $region21
    $region20: #{_lambda_.1} parent=1 // pred_region
      %v312 = vld [vmem:[#allocation2] sm:$0xff]
      %v313 = vld [vmem:[#allocation2 + $0x8] sm:$0xff]
      %v314 = vld [vmem:[#allocation2 + $0x10] sm:$0xff]
      %v315 = vld [vmem:[#allocation2 + $0x18] sm:$0xff]
      %v316 = vld [vmem:[#allocation2 + $0x20] sm:$0xff]
      %v317 = vld [vmem:[#allocation2 + $0x28] sm:$0xff]
      %v318 = vld [vmem:[#allocation2 + $0x30] sm:$0xff]
      %v319 = vld [vmem:[#allocation2 + $0x38] sm:$0xff]
      %v320 = vld [vmem:[#allocation2 + $0x40] sm:$0xff]
      %v321 = vld [vmem:[#allocation2 + $0x48] sm:$0xff]
      %v322 = vld [vmem:[#allocation2 + $0x50] sm:$0xff]
      %v323 = vld [vmem:[#allocation2 + $0x58] sm:$0xff]
      %v324 = vld [vmem:[#allocation2 + $0x60] sm:$0xff]
      %v325 = vld [vmem:[#allocation2 + $0x68] sm:$0xff]
      %v326 = vld [vmem:[#allocation2 + $0x70] sm:$0xff]
      %v327 = vld [vmem:[#allocation2 + $0x78] sm:$0xff]
      %v328 = vld [vmem:[%s2] sm:$0x1]
      %v330 = vlaneseq
      %v331 = vshrl.u32 %v330, 7
      %v332 = vsub.s32 0, %v331
      %v333 = vrot.slane %v328, %v332
      %v335 = vadd.f32 %v312, %v333
      %v336 = vadd.f32 %v313, %v333
      %v337 = vadd.f32 %v314, %v333
      %v338 = vadd.f32 %v315, %v333
      %v339 = vadd.f32 %v316, %v333
      %v340 = vadd.f32 %v317, %v333
      %v341 = vadd.f32 %v318, %v333
      %v342 = vadd.f32 %v319, %v333
      %v343 = vadd.f32 %v320, %v333
      %v344 = vadd.f32 %v321, %v333
      %v345 = vadd.f32 %v322, %v333
      %v346 = vadd.f32 %v323, %v333
      %v347 = vadd.f32 %v324, %v333
      %v348 = vadd.f32 %v325, %v333
      %v349 = vadd.f32 %v326, %v333
      %v350 = vadd.f32 %v327, %v333
      %v351 = vsub.f32 0.0, %v335
      %v352 = vsub.f32 0.0, %v336
      %v353 = vsub.f32 0.0, %v337
      %v354 = vsub.f32 0.0, %v338
      %v355 = vsub.f32 0.0, %v339
      %v356 = vsub.f32 0.0, %v340
      %v357 = vsub.f32 0.0, %v341
      %v358 = vsub.f32 0.0, %v342
      %v359 = vsub.f32 0.0, %v343
      %v360 = vsub.f32 0.0, %v344
      %v361 = vsub.f32 0.0, %v345
      %v362 = vsub.f32 0.0, %v346
      %v363 = vsub.f32 0.0, %v347
      %v364 = vsub.f32 0.0, %v348
      %v365 = vsub.f32 0.0, %v349
      %v366 = vsub.f32 0.0, %v350
      %v367 = vmul.f32 %v351, 1.442695
      %v368 = vpow.pop %v367
      %v369 = vmul.f32 %v352, 1.442695
      %v370 = vpow.pop %v369
      %v371 = vmul.f32 %v353, 1.442695
      %v372 = vpow.pop %v371
      %v373 = vmul.f32 %v354, 1.442695
      %v374 = vpow.pop %v373
      %v375 = vmul.f32 %v355, 1.442695
      %v376 = vpow.pop %v375
      %v377 = vmul.f32 %v356, 1.442695
      %v378 = vpow.pop %v377
      %v379 = vmul.f32 %v357, 1.442695
      %v380 = vpow.pop %v379
      %v381 = vmul.f32 %v358, 1.442695
      %v382 = vpow.pop %v381
      %v383 = vmul.f32 %v359, 1.442695
      %v384 = vpow.pop %v383
      %v385 = vmul.f32 %v360, 1.442695
      %v386 = vpow.pop %v385
      %v387 = vmul.f32 %v361, 1.442695
      %v388 = vpow.pop %v387
      %v389 = vmul.f32 %v362, 1.442695
      %v390 = vpow.pop %v389
      %v391 = vmul.f32 %v363, 1.442695
      %v392 = vpow.pop %v391
      %v393 = vmul.f32 %v364, 1.442695
      %v394 = vpow.pop %v393
      %v395 = vmul.f32 %v365, 1.442695
      %v396 = vpow.pop %v395
      %v397 = vmul.f32 %v366, 1.442695
      %v398 = vpow.pop %v397
      %v399 = vadd.f32 %v368, 1.0
      %v400 = vadd.f32 %v370, 1.0
      %v401 = vadd.f32 %v372, 1.0
      %v402 = vadd.f32 %v374, 1.0
      %v403 = vadd.f32 %v376, 1.0
      %v404 = vadd.f32 %v378, 1.0
      %v405 = vadd.f32 %v380, 1.0
      %v406 = vadd.f32 %v382, 1.0
      %v407 = vadd.f32 %v384, 1.0
      %v408 = vadd.f32 %v386, 1.0
      %v409 = vadd.f32 %v388, 1.0
      %v410 = vadd.f32 %v390, 1.0
      %v411 = vadd.f32 %v392, 1.0
      %v412 = vadd.f32 %v394, 1.0
      %v413 = vadd.f32 %v396, 1.0
      %v414 = vadd.f32 %v398, 1.0
      %v415 = vrcp.pop %v399
      %v416 = vrcp.pop %v400
      %v417 = vrcp.pop %v401
      %v418 = vrcp.pop %v402
      %v419 = vrcp.pop %v403
      %v420 = vrcp.pop %v404
      %v421 = vrcp.pop %v405
      %v422 = vrcp.pop %v406
      %v423 = vrcp.pop %v407
      %v424 = vrcp.pop %v408
      %v425 = vrcp.pop %v409
      %v426 = vrcp.pop %v410
      %v427 = vrcp.pop %v411
      %v428 = vrcp.pop %v412
      %v429 = vrcp.pop %v413
      %v430 = vrcp.pop %v414
      %v431 = vmul.f32 %v335, %v415
      %v432 = vmul.f32 %v336, %v416
      %v433 = vmul.f32 %v337, %v417
      %v434 = vmul.f32 %v338, %v418
      %v435 = vmul.f32 %v339, %v419
      %v436 = vmul.f32 %v340, %v420
      %v437 = vmul.f32 %v341, %v421
      %v438 = vmul.f32 %v342, %v422
      %v439 = vmul.f32 %v343, %v423
      %v440 = vmul.f32 %v344, %v424
      %v441 = vmul.f32 %v345, %v425
      %v442 = vmul.f32 %v346, %v426
      %v443 = vmul.f32 %v347, %v427
      %v444 = vmul.f32 %v348, %v428
      %v445 = vmul.f32 %v349, %v429
      %v446 = vmul.f32 %v350, %v430
      %447 = vst [vmem:[#allocation3] sm:$0xff] %v431
      %448 = vst [vmem:[#allocation3 + $0x8] sm:$0xff] %v432
      %449 = vst [vmem:[#allocation3 + $0x10] sm:$0xff] %v433
      %450 = vst [vmem:[#allocation3 + $0x18] sm:$0xff] %v434
      %451 = vst [vmem:[#allocation3 + $0x20] sm:$0xff] %v435
      %452 = vst [vmem:[#allocation3 + $0x28] sm:$0xff] %v436
      %453 = vst [vmem:[#allocation3 + $0x30] sm:$0xff] %v437
      %454 = vst [vmem:[#allocation3 + $0x38] sm:$0xff] %v438
      %455 = vst [vmem:[#allocation3 + $0x40] sm:$0xff] %v439
      %456 = vst [vmem:[#allocation3 + $0x48] sm:$0xff] %v440
      %457 = vst [vmem:[#allocation3 + $0x50] sm:$0xff] %v441
      %458 = vst [vmem:[#allocation3 + $0x58] sm:$0xff] %v442
      %459 = vst [vmem:[#allocation3 + $0x60] sm:$0xff] %v443
      %460 = vst [vmem:[#allocation3 + $0x68] sm:$0xff] %v444
      %461 = vst [vmem:[#allocation3 + $0x70] sm:$0xff] %v445
      %462 = vst [vmem:[#allocation3 + $0x78] sm:$0xff] %v446
    $region21: #{_lambda_.1} parent=1 // pred_fallthru
      _
    // Predicated region
    $region22: #{_lambda_.1} parent=1 // pred_check
      _
    $region23: #{_lambda_.1} parent=1 // pred_check_branch
      %464 = sbr.rel (0) target = $region25
    $region24: #{_lambda_.1} parent=1 // pred_region
      %s466 = ssub.s32 2048, 2048
      %467 = vsyncadd [#allocation4], %s466
      %s468 = sshll.u32 [#allocation3], 4
      %s469 = int_to_ptr.vmem [resolvable:$true] %s468
      %474 = dma.vmem_to_hbm [thread:$0]  %s469, 2048, %s3, [#allocation4], 128, 128, 8
    $region25: #{_lambda_.1} parent=1 // pred_fallthru
      _
    // Predicated region
    $region26: #{_lambda_.1} parent=1 // pred_check
      _
    $region27: #{_lambda_.1} parent=1 // pred_check_branch
      %476 = sbr.rel (0) target = $region29
    $region28: #{_lambda_.1} parent=1 // pred_region
      %477 = dma.done [#allocation4], 2048
    $region29: #{_lambda_.1} parent=1 // pred_fallthru
      _
    %478 = vsyncpa [#allocation4], 1

</llo_original>
